<compile_context>
chip_gen: v5e
topology: v5e:2x2
jax: 0.10.0
libtpu: 0.0.40
codegen_flags: <defaults>
</compile_context>

<pallas_src>
import functools

import jax
import jax.numpy as jnp
from jax.experimental import pallas as pl
from jax.experimental.pallas import tpu as pltpu

BN_EPS = 1e-5


def _round_up(x, m):
    return ((x + m - 1) // m) * m


def _largest_tile(total, cap):
    """Largest multiple of 128 that divides `total` (a multiple of 128), <= cap."""
    m = total // 128
    best = 1
    for d in range(1, max(1, cap // 128) + 1):
        if d <= m and m % d == 0:
            best = d
    return best * 128


def _row_tile(total, cap):
    """Row tile; keeps >= 2 row tiles when possible so 2-TC chips (v7x) shard."""
    if total >= 256:
        cap = min(cap, max(128, total // 2))
    return _largest_tile(total, cap)


def _vmem_limit_bytes():
    """Per-generation scoped-VMEM budget (limit only; not an allocation)."""
    try:
        kind = jax.devices()[0].device_kind.lower()
    except Exception:
        kind = ""
    if "v7" in kind or "tpu7" in kind:
        return 48 * 1024 * 1024          # 64 MiB physical per TC on v7x
    if "v4" in kind or "v5" in kind or "v6" in kind:
        return 96 * 1024 * 1024          # 128 MiB physical
    return 48 * 1024 * 1024              # conservative default


# --------------------------------------------------------------------------
# Kernel 1: per-node feature transform with BN folded in:  h = x @ W' + h0
# --------------------------------------------------------------------------
def feature_kernel(x_ref, w_ref, h0_ref, h_ref):
    h = jnp.dot(x_ref[...], w_ref[...], preferred_element_type=jnp.float32)
    h_ref[...] = (h + h0_ref[...]).astype(h_ref.dtype)


# --------------------------------------------------------------------------
# Kernel 2: normalized-adjacency aggregation:  out = relu(A_norm @ h + b)
#   grid = (row tiles, k tiles); the f32 output block is resident across k
#   and doubles as the accumulator; bias + ReLU fused into the final-k write.
# --------------------------------------------------------------------------
def aggregate_stream_kernel(a_ref, h_ref, b_ref, out_ref):
    # h streamed as a (t_k, HP) tile per (i, k) step.
    k = pl.program_id(1)

    @pl.when(k == 0)
    def _init():
        out_ref[...] = jnp.zeros_like(out_ref)

    out_ref[...] += jnp.dot(a_ref[...], h_ref[...],
                            preferred_element_type=jnp.float32)

    @pl.when(k == pl.num_programs(1) - 1)
    def _finalize():
        out_ref[...] = jnp.maximum(out_ref[...] + b_ref[...], 0.0)


def aggregate_resident_kernel(a_ref, h_ref, b_ref, out_ref, *, t_k):
    # h fully VMEM-resident (constant block index); slice the k-tile in-kernel.
    k = pl.program_id(1)

    @pl.when(k == 0)
    def _init():
        out_ref[...] = jnp.zeros_like(out_ref)

    start = pl.multiple_of(k * t_k, t_k)
    out_ref[...] += jnp.dot(a_ref[...], h_ref[pl.ds(start, t_k), :],
                            preferred_element_type=jnp.float32)

    @pl.when(k == pl.num_programs(1) - 1)
    def _finalize():
        out_ref[...] = jnp.maximum(out_ref[...] + b_ref[...], 0.0)


# --------------------------------------------------------------------------
# Graph normalization (plain-JAX glue): builds A_norm directly at the padded
# shape and in the MXU dtype so no second O(N^2) pad/cast pass is needed.
# --------------------------------------------------------------------------
def gcn_norm_adj(edge_index, num_nodes, *, padded_nodes=None, dtype=jnp.float32):
    n_pad = num_nodes if padded_nodes is None else padded_nodes
    src, dst = edge_index[0], edge_index[1]
    a = jnp.zeros((n_pad, n_pad), jnp.float32)
    # .add (not .set) so duplicate edges sum, matching PyG message passing.
    a = a.at[dst, src].add(1.0)                      # edge j -> i => A[i, j] = 1
    # TODO(synk): if edge_index already contains self loops their weight is
    # doubled here; PyG's gcn_norm uses add_remaining_self_loops instead.
    self_loops = (jnp.arange(n_pad) < num_nodes).astype(jnp.float32)
    a = a + jnp.diag(self_loops)                     # self loops for real nodes only
    deg = a.sum(axis=1)
    dinv = jnp.where(deg > 0.0, jax.lax.rsqrt(jnp.maximum(deg, 1e-12)), 0.0)
    return (a * dinv[:, None] * dinv[None, :]).astype(dtype)
    # TODO(synk): for large sparse graphs replace the dense A @ h aggregation
    # with a scalar-prefetch gather / segment-sum kernel over edge_index.


# --------------------------------------------------------------------------
# Wrapper
# --------------------------------------------------------------------------
def gnn_layer(x, edge_index, gamma, beta, running_mean, running_var, w, b,
              *, use_bf16=True):
    """GNN_layer('GCN') forward (eval mode).

    x: [N, H] f32, edge_index: [2, E] int, params as in BatchNorm1d(H) /
    GCNConv(H, H).
    """
    N, H = x.shape
    HP = _round_up(H, 128)
    NP = _round_up(N, 128)

    mxu_dtype = jnp.bfloat16 if use_bf16 else jnp.float32
    itemsize = 2 if use_bf16 else 4
    vmem_limit = _vmem_limit_bytes()

    # --- fold BatchNorm (eval) into the GCN linear transform ---------------
    # y = x*s + t  with  s = gamma * rsqrt(var+eps),  t = beta - mean*s
    # y @ W = x @ (s[:,None] * W) + t @ W
    s = gamma * jax.lax.rsqrt(running_var + BN_EPS)            # [H]
    w_fold = s[:, None] * w                                    # [H, H]
    h0 = ((beta - running_mean * s) @ w).reshape(1, H)         # [1, H]

    # --- pad (and cast MXU operands in the same pass) -----------------------
    x_p = jnp.zeros((NP, HP), mxu_dtype).at[:N, :H].set(x.astype(mxu_dtype))
    w_p = jnp.zeros((HP, HP), mxu_dtype).at[:H, :H].set(w_fold.astype(mxu_dtype))
    h0_p = jnp.zeros((1, HP), jnp.float32).at[:, :H].set(h0)
    b_p = jnp.zeros((1, HP), jnp.float32).at[:, :H].set(b.reshape(1, H))
    a_p = gcn_norm_adj(edge_index, N, padded_nodes=NP, dtype=mxu_dtype)

    # --- tile selection ------------------------------------------------------
    h_bytes = NP * HP * itemsize
    h_resident = h_bytes <= vmem_limit // 4        # leave room for A/out buffers
    if h_resident:
        t_m = _row_tile(NP, 512)
        t_k = _largest_tile(NP, 512)
    else:
        t_m = _row_tile(NP, 1024)                  # big row tile => fewer h re-reads
        t_k = _largest_tile(NP, 256)
    t_n = HP if HP <= 1024 else _largest_tile(HP, 512)   # W column tile (large H)

    # --- phase 1: h = x @ W' + h0  (row x out-column grid, bf16 MXU) --------
    h = pl.pallas_call(
        feature_kernel,
        out_shape=jax.ShapeDtypeStruct((NP, HP), mxu_dtype),
        grid_spec=pltpu.PrefetchScalarGridSpec(
            num_scalar_prefetch=0,
            grid=(NP // t_m, HP // t_n),
            in_specs=[pl.BlockSpec((t_m, HP), lambda i, j: (i, 0)),
                      pl.BlockSpec((HP, t_n), lambda i, j: (0, j)),
                      pl.BlockSpec((1, t_n), lambda i, j: (0, j))],
            out_specs=pl.BlockSpec((t_m, t_n), lambda i, j: (i, j))),
        compiler_params=pltpu.CompilerParams(
            dimension_semantics=("parallel", "parallel"),
            vmem_limit_bytes=vmem_limit),
        cost_estimate=pl.CostEstimate(
            flops=2 * NP * HP * HP,
            transcendentals=0,
            bytes_accessed=(NP * HP * itemsize
                            + (NP // t_m) * HP * HP * itemsize
                            + NP * HP * itemsize)),
    )(x_p, w_p, h0_p)

    # --- phase 2: out = relu(A_norm @ h + b)  (row x k grid) ----------------
    if h_resident:
        agg_kernel = functools.partial(aggregate_resident_kernel, t_k=t_k)
        h_spec = pl.BlockSpec((NP, HP), lambda i, k: (0, 0))   # fetched once
        h_read_bytes = NP * HP * itemsize
    else:
        agg_kernel = aggregate_stream_kernel
        h_spec = pl.BlockSpec((t_k, HP), lambda i, k: (k, 0))
        h_read_bytes = (NP // t_m) * NP * HP * itemsize

    out_p = pl.pallas_call(
        agg_kernel,
        out_shape=jax.ShapeDtypeStruct((NP, HP), jnp.float32),
        grid_spec=pltpu.PrefetchScalarGridSpec(
            num_scalar_prefetch=0,
            grid=(NP // t_m, NP // t_k),
            in_specs=[pl.BlockSpec((t_m, t_k), lambda i, k: (i, k)),
                      h_spec,
                      pl.BlockSpec((1, HP), lambda i, k: (0, 0))],
            out_specs=pl.BlockSpec((t_m, HP), lambda i, k: (i, 0))),
        compiler_params=pltpu.CompilerParams(
            dimension_semantics=("parallel", "arbitrary"),
            vmem_limit_bytes=vmem_limit),
        cost_estimate=pl.CostEstimate(
            flops=2 * NP * NP * HP,
            transcendentals=0,
            bytes_accessed=NP * NP * itemsize + h_read_bytes + NP * HP * 4),
    )(a_p, h, b_p)

    return out_p[:N, :H].astype(x.dtype)


def reference(x, a_norm, gamma, beta, mean, var, w, b):
    y = (x - mean) * jax.lax.rsqrt(var + BN_EPS) * gamma + beta
    out = a_norm @ (y @ w) + b
    return jnp.maximum(out, 0.0)


if __name__ == "__main__":
    N, H = 16, 32                               # nodes, hidden
    key = jax.random.PRNGKey(0)
    kx, kg, kb, km, kv, kw, kbi = jax.random.split(key, 7)

    # Deterministic synthetic parameters (BatchNorm1d(H), GCNConv(H, H)).
    x = jax.random.normal(kx, (N, H), jnp.float32)
    gamma = jax.random.normal(kg, (H,), jnp.float32) * 0.1 + 1.0
    beta = jax.random.normal(kb, (H,), jnp.float32) * 0.1
    running_mean = jax.random.normal(km, (H,), jnp.float32) * 0.1
    running_var = jax.random.uniform(kv, (H,), jnp.float32, 0.5, 1.5)
    w = jax.random.normal(kw, (H, H), jnp.float32) * (1.0 / jnp.sqrt(H))
    b = jax.random.normal(kbi, (H,), jnp.float32) * 0.1

    # Deterministic small graph: bidirectional ring over N nodes.
    idx = jnp.arange(N, dtype=jnp.int32)
    src = jnp.concatenate([idx, (idx + 1) % N])
    dst = jnp.concatenate([(idx + 1) % N, idx])
    edge_index = jnp.stack([src, dst])          # [2, E], E = 2N

    a_norm = gcn_norm_adj(edge_index, N)        # unpadded f32, for the reference
    ref = reference(x, a_norm, gamma, beta, running_mean.reshape(1, H),
                    running_var.reshape(1, H), w, b.reshape(1, H))

    # bf16 MXU operands (default fast path): f32 accumulation, loose tolerance.
    out_bf16 = jax.block_until_ready(
        gnn_layer(x, edge_index, gamma, beta, running_mean, running_var, w, b,
                  use_bf16=True))
    assert out_bf16.shape == (N, H)
    assert jnp.allclose(out_bf16, ref, atol=1e-1, rtol=1e-1), \
        "bf16 kernel mismatch vs reference"

    # Full-f32 path: tight check against the reference.
    out_f32 = jax.block_until_ready(
        gnn_layer(x, edge_index, gamma, beta, running_mean, running_var, w, b,
                  use_bf16=False))
    assert jnp.allclose(out_f32, ref, atol=1e-4, rtol=1e-4), \
        "f32 kernel mismatch vs reference"

    # TODO(synk): training-mode stochastic dropout and batch-statistic
    # BatchNorm are not implemented; eval-mode semantics are reproduced.
    print("KERNEL_OK")
</pallas_src>

<mosaic_0001>
module attributes {stable_mosaic.version = 11 : i64} {
  func.func @feature_kernel(%arg0: i32, %arg1: i32, %arg2: memref<128x128xbf16, #tpu.memory_space<vmem>>, %arg3: memref<128x128xbf16, #tpu.memory_space<vmem>>, %arg4: memref<1x128xf32, #tpu.memory_space<vmem>>, %arg5: memref<128x128xbf16, #tpu.memory_space<vmem>>) attributes {dimension_semantics = [#tpu.dimension_semantics<parallel>, #tpu.dimension_semantics<parallel>], iteration_bounds = array<i64: 1, 1>, scalar_prefetch = 0 : i64, scratch_operands = 0 : i64, tpu.core_type = #tpu.core_type<tc>, window_params = [{transform_indices = @transform_0, window_bounds = array<i64: 128, 128>}, {transform_indices = @transform_1, window_bounds = array<i64: 128, 128>}, {transform_indices = @transform_2, window_bounds = array<i64: 1, 128>}, {transform_indices = @transform_3, window_bounds = array<i64: 128, 128>}]} {
    %c0 = arith.constant 0 : index
    %c0_0 = arith.constant 0 : index
    %0 = vector.load %arg2[%c0, %c0_0] : memref<128x128xbf16, #tpu.memory_space<vmem>>, vector<128x128xbf16>
    %c0_1 = arith.constant 0 : index
    %c0_2 = arith.constant 0 : index
    %1 = vector.load %arg3[%c0_1, %c0_2] : memref<128x128xbf16, #tpu.memory_space<vmem>>, vector<128x128xbf16>
    %cst = arith.constant dense<0.000000e+00> : vector<128x128xf32>
    %2 = tpu.matmul %0, %1, %cst {dimension_numbers = #tpu.dot_dimension_numbers<[1], [0], [0], [1], [0, 0, 1, 1], [], []>} : vector<128x128xbf16>, vector<128x128xbf16>, vector<128x128xf32> -> vector<128x128xf32>
    %c0_3 = arith.constant 0 : index
    %c0_4 = arith.constant 0 : index
    %3 = vector.load %arg4[%c0_3, %c0_4] : memref<1x128xf32, #tpu.memory_space<vmem>>, vector<1x128xf32>
    %4 = vector.broadcast %3 : vector<1x128xf32> to vector<128x128xf32>
    %5 = arith.addf %2, %4 : vector<128x128xf32>
    %6 = arith.truncf %5 : vector<128x128xf32> to vector<128x128xbf16>
    %c0_5 = arith.constant 0 : index
    %c0_6 = arith.constant 0 : index
    %7 = vector.load %arg5[%c0_5, %c0_6] : memref<128x128xbf16, #tpu.memory_space<vmem>>, vector<128x128xbf16>
    tpu.vector_store %arg5[%c0_5, %c0_6], %6 {strides = array<i32>} : memref<128x128xbf16, #tpu.memory_space<vmem>>, vector<128x128xbf16>,
    return
  }
  func.func @transform_0(%arg0: i32, %arg1: i32) -> (i32, i32) {
    %c0_i32 = arith.constant 0 : i32
    %c0_i32_0 = arith.constant 0 : i32
    return %arg0, %c0_i32 : i32, i32
  }
  func.func @transform_1(%arg0: i32, %arg1: i32) -> (i32, i32) {
    %c0_i32 = arith.constant 0 : i32
    %c0_i32_0 = arith.constant 0 : i32
    return %c0_i32, %arg1 : i32, i32
  }
  func.func @transform_2(%arg0: i32, %arg1: i32) -> (i32, i32) {
    %c0_i32 = arith.constant 0 : i32
    %c0_i32_0 = arith.constant 0 : i32
    return %c0_i32, %arg1 : i32, i32
  }
  func.func @transform_3(%arg0: i32, %arg1: i32) -> (i32, i32) {
    %c0_i32 = arith.constant 0 : i32
    return %arg0, %arg1 : i32, i32
  }
}

</mosaic_0001>

<llo_original>
// kernel: tpu_custom_call.1
$region0: #{tpu_custom_call.1}
  #allocation0 [shape = 'u32[]', space=smem, size = 0x4, offset = 0x4, fixed_abs, tag = 'smem constant byte address 0x4 - core index']
  #allocation1 [shape = 'u32[72,128]{1,0:T(1,128)}', space=vmem, size = 0x9000, scoped, tag = 'internal scratch']
  %s0 = inlined_call_operand.hbm [shape: bf16[128,128], index: 0, kind: input, shape index: {}]
  %s1 = inlined_call_operand.hbm [shape: bf16[128,128], index: 1, kind: input, shape index: {}]
  %s2 = inlined_call_operand.vmem [shape: f32[1,128], index: 2, kind: input, shape index: {}]
  %s3 = inlined_call_operand.hbm [shape: bf16[128,128], index: 3, kind: output, shape index: {}]
  %s4 = sld [smem:[#allocation0]]
  $region30: #{tpu_custom_call.1} parent=0
    _
  %s6 = ssub.s32 1, %s4
  %s7 = scalar_select 0, %s6, %s4
  $region1: #{tpu_custom_call.1} parent=0
    #allocation2 [shape = 'u8[32768]{0}', space=vmem, size = 0x8000, scoped, tag = 'input window, operand 0, single buffered']
    #allocation3 [shape = 's32[1]{0}', space=sflag, size = 0x4, scoped, tag = 'scoped memory for tpu_custom_call.1']
    #allocation4 [shape = 's32[1]{0}', space=sflag, size = 0x4, scoped, tag = 'scoped memory for tpu_custom_call.1']
    #allocation5 [shape = 'u8[32768]{0}', space=vmem, size = 0x8000, scoped, tag = 'input window, operand 1, single buffered']
    #allocation6 [shape = 's32[1]{0}', space=sflag, size = 0x4, scoped, tag = 'scoped memory for tpu_custom_call.1']
    #allocation7 [shape = 'u8[32768]{0}', space=vmem, size = 0x8000, scoped, tag = 'output window, operand 0, single buffered']
    %8 = vsyncpa [#allocation3], 0
    %9 = vsyncpa [#allocation6], 0
    %10 = vsyncpa [#allocation4], 0
    // Predicated region
    $region2: #{tpu_custom_call.1} parent=1 // pred_check
      _
    $region3: #{tpu_custom_call.1} parent=1 // pred_check_branch
      %12 = sbr.rel (0) target = $region5
    $region4: #{tpu_custom_call.1} parent=1 // pred_region
      %14 = vsyncadd [#allocation3], 0
      %s15 = sshll.u32 %s0, 4
      %s16 = int_to_ptr.hbm [resolvable:$true] %s15
      %s17 = sshll.u32 [#allocation2], 4
      %s18 = int_to_ptr.vmem [resolvable:$true] %s17
      %23 = dma.hbm_to_vmem [thread:$0]  %s16, 1024, %s18, [#allocation3], 64, 64, 4
    $region5: #{tpu_custom_call.1} parent=1 // pred_fallthru
      _
    // Predicated region
    $region6: #{tpu_custom_call.1} parent=1 // pred_check
      _
    $region7: #{tpu_custom_call.1} parent=1 // pred_check_branch
      %25 = sbr.rel (0) target = $region9
    $region8: #{tpu_custom_call.1} parent=1 // pred_region
      %27 = vsyncadd [#allocation6], 0
      %s28 = sshll.u32 %s1, 4
      %s29 = int_to_ptr.hbm [resolvable:$true] %s28
      %s30 = sshll.u32 [#allocation5], 4
      %s31 = int_to_ptr.vmem [resolvable:$true] %s30
      %36 = dma.hbm_to_vmem [thread:$0]  %s29, 1024, %s31, [#allocation6], 64, 64, 4
    $region9: #{tpu_custom_call.1} parent=1 // pred_fallthru
      _
    // Predicated region
    $region10: #{tpu_custom_call.1} parent=1 // pred_check
      _
    $region11: #{tpu_custom_call.1} parent=1 // pred_check_branch
      %38 = sbr.rel (0) target = $region13
    $region12: #{tpu_custom_call.1} parent=1 // pred_region
      _
    $region13: #{tpu_custom_call.1} parent=1 // pred_fallthru
      _
    // Predicated region
    $region14: #{tpu_custom_call.1} parent=1 // pred_check
      _
    $region15: #{tpu_custom_call.1} parent=1 // pred_check_branch
      %40 = sbr.rel (0) target = $region17
    $region16: #{tpu_custom_call.1} parent=1 // pred_region
      %42 = dma.done [#allocation3], 1024
    $region17: #{tpu_custom_call.1} parent=1 // pred_fallthru
      _
    // Predicated region
    $region18: #{tpu_custom_call.1} parent=1 // pred_check
      _
    $region19: #{tpu_custom_call.1} parent=1 // pred_check_branch
      %44 = sbr.rel (0) target = $region21
    $region20: #{tpu_custom_call.1} parent=1 // pred_region
      %46 = dma.done [#allocation6], 1024
    $region21: #{tpu_custom_call.1} parent=1 // pred_fallthru
      _
    %v47 = vld [vmem:[#allocation2] sm:$0xf]
    %v48 = vld [vmem:[#allocation2 + $0x4] sm:$0xf]
    %v49 = vld [vmem:[#allocation2 + $0x8] sm:$0xf]
    %v50 = vld [vmem:[#allocation2 + $0xc] sm:$0xf]
    %v51 = vld [vmem:[#allocation2 + $0x10] sm:$0xf]
    %v52 = vld [vmem:[#allocation2 + $0x14] sm:$0xf]
    %v53 = vld [vmem:[#allocation2 + $0x18] sm:$0xf]
    %v54 = vld [vmem:[#allocation2 + $0x1c] sm:$0xf]
    %v55 = vld [vmem:[#allocation2 + $0x20] sm:$0xf]
    %v56 = vld [vmem:[#allocation2 + $0x24] sm:$0xf]
    %v57 = vld [vmem:[#allocation2 + $0x28] sm:$0xf]
    %v58 = vld [vmem:[#allocation2 + $0x2c] sm:$0xf]
    %v59 = vld [vmem:[#allocation2 + $0x30] sm:$0xf]
    %v60 = vld [vmem:[#allocation2 + $0x34] sm:$0xf]
    %v61 = vld [vmem:[#allocation2 + $0x38] sm:$0xf]
    %v62 = vld [vmem:[#allocation2 + $0x3c] sm:$0xf]
    %v63 = vld [vmem:[#allocation5] sm:$0xf]
    %v64 = vld [vmem:[#allocation5 + $0x4] sm:$0xf]
    %v65 = vld [vmem:[#allocation5 + $0x8] sm:$0xf]
    %v66 = vld [vmem:[#allocation5 + $0xc] sm:$0xf]
    %v67 = vld [vmem:[#allocation5 + $0x10] sm:$0xf]
    %v68 = vld [vmem:[#allocation5 + $0x14] sm:$0xf]
    %v69 = vld [vmem:[#allocation5 + $0x18] sm:$0xf]
    %v70 = vld [vmem:[#allocation5 + $0x1c] sm:$0xf]
    %v71 = vld [vmem:[#allocation5 + $0x20] sm:$0xf]
    %v72 = vld [vmem:[#allocation5 + $0x24] sm:$0xf]
    %v73 = vld [vmem:[#allocation5 + $0x28] sm:$0xf]
    %v74 = vld [vmem:[#allocation5 + $0x2c] sm:$0xf]
    %v75 = vld [vmem:[#allocation5 + $0x30] sm:$0xf]
    %v76 = vld [vmem:[#allocation5 + $0x34] sm:$0xf]
    %v77 = vld [vmem:[#allocation5 + $0x38] sm:$0xf]
    %v78 = vld [vmem:[#allocation5 + $0x3c] sm:$0xf]
    %v79 = vld [vmem:[%s2] sm:$0x1]
    %v81 = vperm.slane %v79, 0
    %v99 = vunpack.c.l.b16 %v47
    %v100 = vunpack.c.l.b16 %v48
    %v101 = vunpack.c.l.b16 %v49
    %v102 = vunpack.c.l.b16 %v50
    %v103 = vunpack.c.l.b16 %v51
    %v104 = vunpack.c.l.b16 %v52
    %v105 = vunpack.c.l.b16 %v53
    %v106 = vunpack.c.l.b16 %v54
    %v107 = vunpack.c.l.b16 %v55
    %v108 = vunpack.c.l.b16 %v56
    %v109 = vunpack.c.l.b16 %v57
    %v110 = vunpack.c.l.b16 %v58
    %v111 = vunpack.c.l.b16 %v59
    %v112 = vunpack.c.l.b16 %v60
    %v113 = vunpack.c.l.b16 %v61
    %v114 = vunpack.c.l.b16 %v62
    %v115 = vpack.c.b16 %v100, %v99
    %v116 = vpack.c.b16 %v102, %v101
    %v117 = vpack.c.b16 %v104, %v103
    %v118 = vpack.c.b16 %v106, %v105
    %v119 = vpack.c.b16 %v108, %v107
    %v120 = vpack.c.b16 %v110, %v109
    %v121 = vpack.c.b16 %v112, %v111
    %v122 = vpack.c.b16 %v114, %v113
    %v147 = vunpack.c.l.b16 %v63
    %v148 = vunpack.c.l.b16 %v64
    %v149 = vunpack.c.l.b16 %v65
    %v150 = vunpack.c.l.b16 %v66
    %v151 = vunpack.c.l.b16 %v67
    %v152 = vunpack.c.l.b16 %v68
    %v153 = vunpack.c.l.b16 %v69
    %v154 = vunpack.c.l.b16 %v70
    %v155 = vunpack.c.l.b16 %v71
    %v156 = vunpack.c.l.b16 %v72
    %v157 = vunpack.c.l.b16 %v73
    %v158 = vunpack.c.l.b16 %v74
    %v159 = vunpack.c.l.b16 %v75
    %v160 = vunpack.c.l.b16 %v76
    %v161 = vunpack.c.l.b16 %v77
    %v162 = vunpack.c.l.b16 %v78
    %v163 = vpack.c.b16 %v148, %v147
    %v164 = vpack.c.b16 %v150, %v149
    %v165 = vpack.c.b16 %v152, %v151
    %v166 = vpack.c.b16 %v154, %v153
    %v167 = vpack.c.b16 %v156, %v155
    %v168 = vpack.c.b16 %v158, %v157
    %v169 = vpack.c.b16 %v160, %v159
    %v170 = vpack.c.b16 %v162, %v161
    %179 = vmatpush.bf16.msra.mxu0 %v170
    %180 = vmatpush.bf16.msra.mxu0 %v169
    %181 = vmatpush.bf16.msra.mxu0 %v168
    %182 = vmatpush.bf16.msra.mxu0 %v167
    %183 = vmatpush.bf16.msra.mxu0 %v166
    %184 = vmatpush.bf16.msra.mxu0 %v165
    %185 = vmatpush.bf16.msra.mxu0 %v164
    %186 = vmatpush.bf16.msra.mxu0 %v163
    %187 = vmatmul.bf16.gmra.mxu0 %v115
    %v188 = vpop.f32.mrf.mxu0
    %v189 = vadd.f32 %v81, %v188
    %v190 = vpop.f32.mrf.mxu0
    %v191 = vadd.f32 %v81, %v190
    %192 = vmatmul.bf16.gmra.mxu0 %v116
    %v193 = vpop.f32.mrf.mxu0
    %v194 = vadd.f32 %v81, %v193
    %v195 = vpop.f32.mrf.mxu0
    %v196 = vadd.f32 %v81, %v195
    %197 = vmatmul.bf16.gmra.mxu0 %v117
    %v198 = vpop.f32.mrf.mxu0
    %v199 = vadd.f32 %v81, %v198
    %v200 = vpop.f32.mrf.mxu0
    %v201 = vadd.f32 %v81, %v200
    %202 = vmatmul.bf16.gmra.mxu0 %v118
    %v203 = vpop.f32.mrf.mxu0
    %v204 = vadd.f32 %v81, %v203
    %v205 = vpop.f32.mrf.mxu0
    %v206 = vadd.f32 %v81, %v205
    %207 = vmatmul.bf16.gmra.mxu0 %v119
    %v208 = vpop.f32.mrf.mxu0
    %v209 = vadd.f32 %v81, %v208
    %v210 = vpop.f32.mrf.mxu0
    %v211 = vadd.f32 %v81, %v210
    %212 = vmatmul.bf16.gmra.mxu0 %v120
    %v213 = vpop.f32.mrf.mxu0
    %v214 = vadd.f32 %v81, %v213
    %v215 = vpop.f32.mrf.mxu0
    %v216 = vadd.f32 %v81, %v215
    %217 = vmatmul.bf16.gmra.mxu0 %v121
    %v218 = vpop.f32.mrf.mxu0
    %v219 = vadd.f32 %v81, %v218
    %v220 = vpop.f32.mrf.mxu0
    %v221 = vadd.f32 %v81, %v220
    %222 = vmatmul.bf16.gmra.mxu0 %v122
    %v223 = vpop.f32.mrf.mxu0
    %v224 = vadd.f32 %v81, %v223
    %v225 = vpop.f32.mrf.mxu0
    %v226 = vadd.f32 %v81, %v225
    %227 = vdwg.mxu0
    %v228 = vpack.c.bf16 %v189, %v189
    %v229 = vpack.c.bf16 %v191, %v191
    %v230 = vpack.c.bf16 %v194, %v194
    %v231 = vpack.c.bf16 %v196, %v196
    %v232 = vpack.c.bf16 %v199, %v199
    %v233 = vpack.c.bf16 %v201, %v201
    %v234 = vpack.c.bf16 %v204, %v204
    %v235 = vpack.c.bf16 %v206, %v206
    %v236 = vpack.c.bf16 %v209, %v209
    %v237 = vpack.c.bf16 %v211, %v211
    %v238 = vpack.c.bf16 %v214, %v214
    %v239 = vpack.c.bf16 %v216, %v216
    %v240 = vpack.c.bf16 %v219, %v219
    %v241 = vpack.c.bf16 %v221, %v221
    %v242 = vpack.c.bf16 %v224, %v224
    %v243 = vpack.c.bf16 %v226, %v226
    %244 = vst [vmem:[#allocation7] sm:$0xf] %v228
    %245 = vst [vmem:[#allocation7 + $0x4] sm:$0xf] %v229
    %246 = vst [vmem:[#allocation7 + $0x8] sm:$0xf] %v230
    %247 = vst [vmem:[#allocation7 + $0xc] sm:$0xf] %v231
    %248 = vst [vmem:[#allocation7 + $0x10] sm:$0xf] %v232
    %249 = vst [vmem:[#allocation7 + $0x14] sm:$0xf] %v233
    %250 = vst [vmem:[#allocation7 + $0x18] sm:$0xf] %v234
    %251 = vst [vmem:[#allocation7 + $0x1c] sm:$0xf] %v235
    %252 = vst [vmem:[#allocation7 + $0x20] sm:$0xf] %v236
    %253 = vst [vmem:[#allocation7 + $0x24] sm:$0xf] %v237
    %254 = vst [vmem:[#allocation7 + $0x28] sm:$0xf] %v238
    %255 = vst [vmem:[#allocation7 + $0x2c] sm:$0xf] %v239
    %256 = vst [vmem:[#allocation7 + $0x30] sm:$0xf] %v240
    %257 = vst [vmem:[#allocation7 + $0x34] sm:$0xf] %v241
    %258 = vst [vmem:[#allocation7 + $0x38] sm:$0xf] %v242
    %259 = vst [vmem:[#allocation7 + $0x3c] sm:$0xf] %v243
    // Predicated region
    $region22: #{tpu_custom_call.1} parent=1 // pred_check
      _
    $region23: #{tpu_custom_call.1} parent=1 // pred_check_branch
      %261 = sbr.rel (0) target = $region25
    $region24: #{tpu_custom_call.1} parent=1 // pred_region
      %263 = vsyncadd [#allocation4], 0
      %s264 = sshll.u32 [#allocation7], 4
      %s265 = int_to_ptr.vmem [resolvable:$true] %s264
      %s266 = sshll.u32 %s3, 4
      %s267 = int_to_ptr.hbm [resolvable:$true] %s266
      %272 = dma.vmem_to_hbm [thread:$0]  %s265, 1024, %s267, [#allocation4], 64, 64, 4
    $region25: #{tpu_custom_call.1} parent=1 // pred_fallthru
      _
    // Predicated region
    $region26: #{tpu_custom_call.1} parent=1 // pred_check
      _
    $region27: #{tpu_custom_call.1} parent=1 // pred_check_branch
      %274 = sbr.rel (0) target = $region29
    $region28: #{tpu_custom_call.1} parent=1 // pred_region
      %276 = dma.done [#allocation4], 1024
    $region29: #{tpu_custom_call.1} parent=1 // pred_fallthru
      _
    %277 = vsyncpa [#allocation3], 1
    %278 = vsyncpa [#allocation6], 1
    %279 = vsyncpa [#allocation4], 1

</llo_original>
